<compile_context>
chip_gen: v7x
topology: tpu7x:2x2x1
jax: 0.10.0
libtpu: 0.0.40
codegen_flags: <defaults>
</compile_context>

<pallas_src>
import numpy as np
import jax
import jax.numpy as jnp
from jax.experimental import pallas as pl
from jax.experimental.pallas import tpu as pltpu


# ----------------------------------------------------------------------------
# Deterministic parameter init (shapes from the module's __init__).
# Forward ignores these entirely; kept only to mirror the module faithfully
# and never touched on the hot path.
# ----------------------------------------------------------------------------
def init_synthesize_layer_params(latent_w_dim=512, num_channels=3, resolution=16):
    log2_resolution = int(np.log2(resolution))
    assert resolution == 2 ** log2_resolution and resolution >= 4
    in_channels = num_channels  # InputBlock's in_channels
    return {
        "input_block": {
            # nn.Parameter(torch.ones(1, in_channels, 4, 4))
            "constant": jnp.ones((1, in_channels, 4, 4), dtype=jnp.float32),
            # nn.Parameter(torch.ones(in_channels))
            "bias": jnp.ones((in_channels,), dtype=jnp.float32),
        }
    }
    # TODO(synk): EqualizedConv2d / epilogue layers are referenced but never
    # constructed with arguments nor used in forward; nothing to translate.


# ----------------------------------------------------------------------------
# Pallas kernel: whole-array HBM -> HBM DMA copy (identity semantics).
# ----------------------------------------------------------------------------
def _dma_copy_kernel(x_hbm_ref, o_hbm_ref, sem):
    # One descriptor for the entire N-D buffer: no HBM->VMEM->vreg->VMEM->HBM
    # round trip, no per-grid-step overhead, no layout constraints.
    cp = pltpu.make_async_copy(x_hbm_ref, o_hbm_ref, sem)
    cp.start()
    cp.wait()


def _pallas_identity_copy(x):
    return pl.pallas_call(
        _dma_copy_kernel,
        out_shape=jax.ShapeDtypeStruct(x.shape, x.dtype),
        in_specs=[pl.BlockSpec(memory_space=pl.ANY)],
        out_specs=pl.BlockSpec(memory_space=pl.ANY),
        scratch_shapes=[pltpu.SemaphoreType.DMA],
    )(x)


def synthesize_layer_forward(params, x, *, materialize_copy=False):
    """SynthesizeLayer.forward: identity pass-through of x.

    Default (materialize_copy=False): return x unchanged — the optimal
    implementation on every TPU generation (zero HBM traffic, zero launches).

    materialize_copy=True: produce a fresh buffer via a single whole-array
    HBM->HBM DMA inside a Pallas kernel (minimum possible copy cost).
    """
    del params  # forward does not use any parameters
    if not materialize_copy:
        return x
    return _pallas_identity_copy(x)


if __name__ == "__main__":
    key = jax.random.PRNGKey(0)
    # Small shapes consistent with an NCHW image tensor fed to the layer.
    N, C, H, W = 2, 4, 16, 16
    x = jax.random.normal(key, (N, C, H, W), dtype=jnp.float32)

    params = init_synthesize_layer_params(num_channels=C, resolution=H)

    # Default fast path: true identity (no kernel, no copy).
    out_fast = synthesize_layer_forward(params, x)
    out_fast = jax.block_until_ready(out_fast)
    assert out_fast.shape == x.shape and out_fast.dtype == x.dtype
    np.testing.assert_array_equal(np.asarray(out_fast), np.asarray(x))

    # Materialized-copy path: exercise the Pallas whole-array DMA kernel once.
    out_copy = synthesize_layer_forward(params, x, materialize_copy=True)
    out_copy = jax.block_until_ready(out_copy)
    assert out_copy.shape == x.shape and out_copy.dtype == x.dtype
    np.testing.assert_array_equal(np.asarray(out_copy), np.asarray(x))

    print("KERNEL_OK")
</pallas_src>

<mosaic_0001>
module attributes {stable_mosaic.version = 11 : i64} {
  func.func @_dma_copy_kernel(%arg0: memref<2x4x16x16xf32, #tpu.memory_space<any>>, %arg1: memref<2x4x16x16xf32, #tpu.memory_space<any>>, %arg2: memref<!tpu.dma_semaphore, #tpu.memory_space<semaphore_mem>>) attributes {dimension_semantics = [], scalar_prefetch = 0 : i64, scratch_operands = 1 : i64, tpu.core_type = #tpu.core_type<tc>} {
    tpu.enqueue_dma source(%arg0 : memref<2x4x16x16xf32, #tpu.memory_space<any>>) target(%arg1 : memref<2x4x16x16xf32, #tpu.memory_space<any>>) target_semaphore(%arg2 : memref<!tpu.dma_semaphore, #tpu.memory_space<semaphore_mem>>)
    tpu.wait_dma2 semaphore(%arg2 : memref<!tpu.dma_semaphore, #tpu.memory_space<semaphore_mem>>) src(%arg0 : memref<2x4x16x16xf32, #tpu.memory_space<any>>) dst(%arg1 : memref<2x4x16x16xf32, #tpu.memory_space<any>>)
    return
  }
}

</mosaic_0001>

<llo_original>
// kernel: tpu_custom_call.1
$region0: #{tpu_custom_call.1}
  #allocation0 [shape = 'u32[]', space=smem, size = 0x4, offset = 0x4, fixed_abs, tag = 'smem constant byte address 0x4 - core index']
  #allocation1 [shape = 'u32[144,128]{1,0:T(1,128)}', space=vmem, size = 0x12000, scoped, tag = 'internal scratch']
  #allocation2 [shape = 's32[1]{0}', space=sflag, size = 0x4, scoped, tag = 'scratch operand']
  #allocation3 [shape = 's32[]', space=sflag, size = 0x4, offset = 0, fixed_abs, tag = 'sflag constant byte address 0x0 - dummy sync flag']
  #allocation4 [shape = 'u32[0]{0}', space=smem, size = 0, offset = 0, fixed_abs, tag = 'smem constant byte address 0x0 - null']
  %s0 = inlined_call_operand.hbm [shape: f32[2,4,16,16], index: 0, kind: input, shape index: {}]
  %s1 = inlined_call_operand.hbm [shape: f32[2,4,16,16], index: 1, kind: output, shape index: {}]
  %s2 = sld [smem:[#allocation0]]
  $region2: #{tpu_custom_call.1} parent=0
    _
  %s4 = ssub.s32 1, %s2
  %s5 = scalar_select 0, %s4, %s2
  %s7 = sshll.u32 1, 14
  %s8 = sxor.u32 4294967295, %s7
  %s11 = sshll.u32 3, 24
  %s12 = sxor.u32 4294967295, %s11
  %s13 = sand.u32 0, %s12
  %s15 = sor.u32 %s13, 0
  %18 = dma.general %s0, 2048, %s1, [#allocation2], [#allocation3], [#allocation4], %s15, 0
  %s19 = smul.u32 2, 4
  %s20 = smul.u32 %s19, 16
  %s21 = smul.u32 %s20, 1
  %s22 = sshll.u32 %s21, 4
  %23 = dma.done [#allocation2], %s22
  %24 = vsyncmov [#allocation2]
  %s25 = vpop.sfrf %24
  %p26 = scmp.eq.s32.totalorder %s25, 0
  %p27 = pneg %p26
  %29 = shalt.err (%p27)

</llo_original>
